<compile_context>
chip_gen: v7x
topology: tpu7x:2x2x1
jax: 0.10.0
libtpu: 0.0.40
codegen_flags: <defaults>
</compile_context>

<pallas_src>
import jax
import jax.numpy as jnp
from jax.experimental import pallas as pl
from jax.experimental.pallas import tpu as pltpu


_VMEM_BUDGET_BYTES = 40 * 1024 * 1024   # footprint target (fits v7x 64 MiB/TC)
_VMEM_LIMIT_BYTES = 48 * 1024 * 1024    # scoped VMEM limit handed to Mosaic
_SMALL_INPUT_BYTES = 256 * 1024         # below this, plain XLA wins


def _sublane_multiple(dtype):
    # Second-minor tile multiple per packed dtype: f32 -> 8, bf16 -> 16, i8 -> 32.
    return {4: 8, 2: 16, 1: 32}.get(jnp.dtype(dtype).itemsize, 8)


def _tile_candidates(n, mult):
    """Divisors of n that are multiples of `mult`, plus n itself (descending)."""
    cands = {n}
    d = mult
    while d < n:
        if n % d == 0:
            cands.add(d)
        d += mult
    return sorted(cands, reverse=True)


def _choose_tiles(B, S, DL, in_itemsize, out_itemsize, sub_mult):
    """Pick (tb, ts) batch/sequence tiles under the VMEM budget."""
    tb_cands = _tile_candidates(B, 8)
    if B >= 16:
        # Prefer >= 2 batch blocks so the 'parallel' axis shards across both
        # v7x TensorCores; with large sequence tiles this costs ~nothing on
        # single-TC v5e/v6e.
        two_plus = [t for t in tb_cands if B // t >= 2]
        if two_plus:
            tb_cands = two_plus + [t for t in tb_cands if B // t < 2]
    ts_cands = _tile_candidates(S, sub_mult)

    def footprint(tb, ts):
        x_tile = tb * ts * DL * in_itemsize          # streamed input tile
        x_f32_tmp = tb * ts * DL * 4                 # conservative: f32 temp
        acc = tb * 8 * DL * 4                        # f32 accumulator scratch
        out = tb * max(DL, 128) * out_itemsize       # output tile (lane pad)
        lens = tb * 128 * 4                          # length tile (lane pad)
        return 2 * x_tile + x_f32_tmp + acc + 2 * out + 2 * lens

    best = None
    for tb in tb_cands:
        for ts in ts_cands:                          # descending: largest fit
            fp = footprint(tb, ts)
            if fp <= _VMEM_BUDGET_BYTES:
                return tb, ts
            if best is None or fp < best[2]:
                best = (tb, ts, fp)
    # Nothing fits the budget (extreme D) — fall back to smallest footprint
    # and let the raised vmem limit absorb it if it can.
    return best[0], best[1]


def _make_kernel(ts, sub, g, d_out, approx_reciprocal):
    """Build the pooling kernel for static tile params.

    ts:  sequence-tile rows per grid step (after lane folding)
    sub: sublane slabs kept in the accumulator (8 when ts % 8 == 0, else ts)
    g:   lane-fold factor (1 when D >= 128)
    """

    def kernel(x_ref, len_ref, out_ref, acc_ref):
        # x_ref:   (tb, ts, DL)    streamed input block
        # len_ref: (tb, 1)  f32    lengths
        # out_ref: (tb, d_out)     output block (resident across seq axis)
        # acc_ref: (tb, sub, DL) f32 accumulator scratch
        j = pl.program_id(1)

        @pl.when(j == 0)
        def _init():
            acc_ref[...] = jnp.zeros_like(acc_ref)

        xb = x_ref[...].astype(jnp.float32)                   # (tb, ts, DL)
        tb, _, dl = xb.shape
        if ts == sub:
            acc_ref[...] += xb
        else:
            # Fold ts/sub sublane slabs with plain VPU vreg adds; the
            # cross-sublane (XLU) reduce is deferred to the finalize.
            acc_ref[...] += xb.reshape(tb, ts // sub, sub, dl).sum(axis=1)

        @pl.when(j == pl.num_programs(1) - 1)
        def _finalize():
            s = acc_ref[...].sum(axis=1)                      # (tb, DL), 1 XLU reduce
            if g > 1:
                # Undo the lane folding: sum the g lane groups of width d_out.
                folded = s[:, 0:d_out]
                for k in range(1, g):
                    folded = folded + s[:, k * d_out:(k + 1) * d_out]
                s = folded
            inv = pl.reciprocal(len_ref[...], approx=approx_reciprocal)
            out_ref[...] = (s * inv).astype(out_ref.dtype)

    return kernel


def fasttext(x, x_len, *, block_batch=None, block_seq=None,
             approx_reciprocal=False, force_pallas=False):
    """Pallas equivalent of FastText.forward: sum(x, dim=1) / xLen[:, None].

    x:     (B, S, D) float array (f32 or bf16; bf16 halves HBM traffic,
           accumulation is always f32)
    x_len: (B,) lengths (int or float). Zero lengths give inf/nan, matching
           the PyTorch reference; padded positions must be zero.
    approx_reciprocal: use the EUP approximate reciprocal (~1e-3 rel error);
           default False keeps parity with exact division.
    block_seq refers to the lane-folded sequence length (S // g).
    """
    B, S, D = x.shape
    len_f = x_len.astype(jnp.float32).reshape(B, 1)

    # Tiny inputs: pallas_call launch/pipeline overhead dominates — use XLA.
    if not force_pallas and x.size * x.dtype.itemsize <= _SMALL_INPUT_BYTES:
        return (jnp.sum(x.astype(jnp.float32), axis=1) / len_f).astype(x.dtype)

    # Lane folding: when D < 128, fold g sequence positions into the lane dim
    # so streamed tiles are lane-dense.
    g = 1
    if D < 128 and 128 % D == 0 and S % (128 // D) == 0:
        g = 128 // D
    S_f, DL = S // g, g * D
    x_f = x.reshape(B, S_f, DL)

    sub_mult = _sublane_multiple(x.dtype)
    tb_auto, ts_auto = _choose_tiles(B, S_f, DL, x.dtype.itemsize,
                                     x.dtype.itemsize, sub_mult)
    tb = tb_auto if block_batch is None else block_batch
    ts = ts_auto if block_seq is None else block_seq
    assert B % tb == 0 and S_f % ts == 0, "block sizes must divide B and S//g"
    assert tb == B or tb % 8 == 0, "block_batch must be B or a multiple of 8"
    assert ts == S_f or ts % sub_mult == 0, (
        f"block_seq must be S//g or a multiple of {sub_mult} for {x.dtype}")

    sub = 8 if ts % 8 == 0 else ts
    kernel = _make_kernel(ts, sub, g, D, approx_reciprocal)

    cost = pl.CostEstimate(
        flops=B * S * D,
        transcendentals=0,
        bytes_accessed=(x.size * x.dtype.itemsize
                        + B * D * x.dtype.itemsize + B * 4),
    )

    return pl.pallas_call(
        kernel,
        out_shape=jax.ShapeDtypeStruct((B, D), x.dtype),
        grid_spec=pltpu.PrefetchScalarGridSpec(
            num_scalar_prefetch=0,
            grid=(B // tb, S_f // ts),                    # reduction axis last
            in_specs=[
                pl.BlockSpec((tb, ts, DL), lambda i, j: (i, j, 0)),
                pl.BlockSpec((tb, 1), lambda i, j: (i, 0)),
            ],
            out_specs=pl.BlockSpec((tb, D), lambda i, j: (i, 0)),
            scratch_shapes=[pltpu.VMEM((tb, sub, DL), jnp.float32)],
        ),
        compiler_params=pltpu.CompilerParams(
            dimension_semantics=("parallel", "arbitrary"),
            vmem_limit_bytes=_VMEM_LIMIT_BYTES),
        cost_estimate=cost,
    )(x_f, len_f)


if __name__ == "__main__":
    key = jax.random.PRNGKey(0)
    k1, k2, k3, k4, k5, k6 = jax.random.split(key, 6)

    # 1) Module-sized shape (B=2, S=8, D=32). Real callers should let the
    #    small-input bypass handle this; force the Pallas path here to
    #    exercise the lane-folded kernel (D=32 -> g=4).
    B, S, D = 2, 8, 32
    x = jax.random.normal(k1, (B, S, D), dtype=jnp.float32)
    x_len = jax.random.randint(k2, (B,), 1, S + 1, dtype=jnp.int32)
    y = fasttext(x, x_len, force_pallas=True)
    jax.block_until_ready(y)
    ref = jnp.sum(x, axis=1) / x_len.astype(jnp.float32)[:, None]
    assert y.shape == (B, D)
    assert jnp.allclose(y, ref, atol=1e-5, rtol=1e-5), "mismatch (small/folded)"

    # 2) Larger f32 case: auto tiling, >= 2 batch blocks, deferred-sublane
    #    accumulation path (D=64 -> g=2).
    B2, S2, D2 = 16, 64, 64
    x2 = jax.random.normal(k3, (B2, S2, D2), dtype=jnp.float32)
    x_len2 = jax.random.randint(k4, (B2,), 1, S2 + 1, dtype=jnp.int32)
    y2 = fasttext(x2, x_len2, force_pallas=True)
    jax.block_until_ready(y2)
    ref2 = jnp.sum(x2, axis=1) / x_len2.astype(jnp.float32)[:, None]
    assert jnp.allclose(y2, ref2, atol=1e-4, rtol=1e-5), "mismatch (auto-tiled f32)"

    # 3) bf16 streaming (halves HBM bytes; accumulation stays f32).
    B3, S3, D3 = 8, 128, 128
    x3 = jax.random.normal(k5, (B3, S3, D3), dtype=jnp.float32).astype(jnp.bfloat16)
    x_len3 = jax.random.randint(k6, (B3,), 1, S3 + 1, dtype=jnp.int32)
    y3 = fasttext(x3, x_len3, force_pallas=True)
    jax.block_until_ready(y3)
    ref3 = (jnp.sum(x3.astype(jnp.float32), axis=1)
            / x_len3.astype(jnp.float32)[:, None])
    assert jnp.allclose(y3.astype(jnp.float32), ref3, atol=5e-2, rtol=2e-2), \
        "mismatch (bf16)"

    print("KERNEL_OK")
</pallas_src>

<mosaic_0001>
module attributes {stable_mosaic.version = 11 : i64} {
  func.func @kernel(%arg0: i32, %arg1: i32, %arg2: memref<2x2x128xf32, #tpu.memory_space<vmem>>, %arg3: memref<2x1xf32, #tpu.memory_space<vmem>>, %arg4: memref<2x32xf32, #tpu.memory_space<vmem>>, %arg5: memref<2x2x128xf32, #tpu.memory_space<vmem>>) attributes {dimension_semantics = [#tpu.dimension_semantics<parallel>, #tpu.dimension_semantics<arbitrary>], iteration_bounds = array<i64: 1, 1>, scalar_prefetch = 0 : i64, scratch_operands = 1 : i64, tpu.core_type = #tpu.core_type<tc>, window_params = [{transform_indices = @transform_0, window_bounds = array<i64: 2, 2, 128>}, {transform_indices = @transform_1, window_bounds = array<i64: 2, 1>}, {transform_indices = @transform_2, window_bounds = array<i64: 2, 32>}]} {
    %c0_i32 = arith.constant 0 : i32
    %0 = arith.cmpi eq, %arg1, %c0_i32 : i32
    %1 = arith.extui %0 : i1 to i32
    %c0_i32_0 = arith.constant 0 : i32
    %2 = arith.cmpi ne, %1, %c0_i32_0 : i32
    scf.if %2 {
      %cst = arith.constant 0.000000e+00 : f32
      %10 = vector.broadcast %cst : f32 to vector<2x2x128xf32>
      %c0_11 = arith.constant 0 : index
      %c0_12 = arith.constant 0 : index
      %c0_13 = arith.constant 0 : index
      %11 = vector.load %arg5[%c0_11, %c0_12, %c0_13] : memref<2x2x128xf32, #tpu.memory_space<vmem>>, vector<2x2x128xf32>
      tpu.vector_store %arg5[%c0_11, %c0_12, %c0_13], %10 {strides = array<i32>} : memref<2x2x128xf32, #tpu.memory_space<vmem>>, vector<2x2x128xf32>,
    } else {
    }
    %c0 = arith.constant 0 : index
    %c0_1 = arith.constant 0 : index
    %c0_2 = arith.constant 0 : index
    %3 = vector.load %arg2[%c0, %c0_1, %c0_2] : memref<2x2x128xf32, #tpu.memory_space<vmem>>, vector<2x2x128xf32>
    %c0_3 = arith.constant 0 : index
    %c0_4 = arith.constant 0 : index
    %c0_5 = arith.constant 0 : index
    %4 = vector.load %arg5[%c0_3, %c0_4, %c0_5] : memref<2x2x128xf32, #tpu.memory_space<vmem>>, vector<2x2x128xf32>
    %5 = arith.addf %4, %3 : vector<2x2x128xf32>
    %c0_6 = arith.constant 0 : index
    %c0_7 = arith.constant 0 : index
    %c0_8 = arith.constant 0 : index
    %6 = vector.load %arg5[%c0_6, %c0_7, %c0_8] : memref<2x2x128xf32, #tpu.memory_space<vmem>>, vector<2x2x128xf32>
    tpu.vector_store %arg5[%c0_6, %c0_7, %c0_8], %5 {strides = array<i32>} : memref<2x2x128xf32, #tpu.memory_space<vmem>>, vector<2x2x128xf32>,
    %c0_i32_9 = arith.constant 0 : i32
    %7 = arith.cmpi eq, %arg1, %c0_i32_9 : i32
    %8 = arith.extui %7 : i1 to i32
    %c0_i32_10 = arith.constant 0 : i32
    %9 = arith.cmpi ne, %8, %c0_i32_10 : i32
    scf.if %9 {
      %c0_11 = arith.constant 0 : index
      %c0_12 = arith.constant 0 : index
      %c0_13 = arith.constant 0 : index
      %10 = vector.load %arg5[%c0_11, %c0_12, %c0_13] : memref<2x2x128xf32, #tpu.memory_space<vmem>>, vector<2x2x128xf32>
      %cst = arith.constant dense<0.000000e+00> : vector<2x128xf32>
      %11 = vector.multi_reduction <add>, %10, %cst [1] : vector<2x2x128xf32> to vector<2x128xf32>
      %12 = vector.extract_strided_slice %11 {offsets = [0, 0], sizes = [2, 32], strides = [1, 1]} : vector<2x128xf32> to vector<2x32xf32>
      %13 = vector.extract_strided_slice %11 {offsets = [0, 32], sizes = [2, 32], strides = [1, 1]} : vector<2x128xf32> to vector<2x32xf32>
      %14 = arith.addf %12, %13 : vector<2x32xf32>
      %15 = vector.extract_strided_slice %11 {offsets = [0, 64], sizes = [2, 32], strides = [1, 1]} : vector<2x128xf32> to vector<2x32xf32>
      %16 = arith.addf %14, %15 : vector<2x32xf32>
      %17 = vector.extract_strided_slice %11 {offsets = [0, 96], sizes = [2, 32], strides = [1, 1]} : vector<2x128xf32> to vector<2x32xf32>
      %18 = arith.addf %16, %17 : vector<2x32xf32>
      %c0_14 = arith.constant 0 : index
      %c0_15 = arith.constant 0 : index
      %19 = vector.load %arg3[%c0_14, %c0_15] : memref<2x1xf32, #tpu.memory_space<vmem>>, vector<2x1xf32>
      %20 = tpu.reciprocal %19 : vector<2x1xf32> -> vector<2x1xf32>
      %21 = vector.broadcast %20 : vector<2x1xf32> to vector<2x32xf32>
      %22 = arith.mulf %18, %21 : vector<2x32xf32>
      %c0_16 = arith.constant 0 : index
      %c0_17 = arith.constant 0 : index
      %23 = vector.load %arg4[%c0_16, %c0_17] : memref<2x32xf32, #tpu.memory_space<vmem>>, vector<2x32xf32>
      tpu.vector_store %arg4[%c0_16, %c0_17], %22 {strides = array<i32>} : memref<2x32xf32, #tpu.memory_space<vmem>>, vector<2x32xf32>,
    } else {
    }
    return
  }
  func.func @transform_0(%arg0: i32, %arg1: i32) -> (i32, i32, i32) {
    %c0_i32 = arith.constant 0 : i32
    %c0_i32_0 = arith.constant 0 : i32
    return %arg0, %arg1, %c0_i32 : i32, i32, i32
  }
  func.func @transform_1(%arg0: i32, %arg1: i32) -> (i32, i32) {
    %c0_i32 = arith.constant 0 : i32
    %c0_i32_0 = arith.constant 0 : i32
    return %arg0, %c0_i32 : i32, i32
  }
  func.func @transform_2(%arg0: i32, %arg1: i32) -> (i32, i32) {
    %c0_i32 = arith.constant 0 : i32
    %c0_i32_0 = arith.constant 0 : i32
    return %arg0, %c0_i32 : i32, i32
  }
}

</mosaic_0001>

<llo_original>
// kernel: tpu_custom_call.1
$region0: #{tpu_custom_call.1}
  #allocation0 [shape = 'u32[]', space=smem, size = 0x4, offset = 0x4, fixed_abs, tag = 'smem constant byte address 0x4 - core index']
  #allocation1 [shape = 'u32[144,128]{1,0:T(1,128)}', space=vmem, size = 0x12000, scoped, tag = 'internal scratch']
  #allocation2 [shape = 'f32[2,2,128]{2,1,0:T(2,128)}', space=vmem, size = 0x800, scoped, tag = 'scratch operand']
  %s0 = inlined_call_operand.hbm [shape: f32[2,2,128], index: 0, kind: input, shape index: {}]
  %s1 = inlined_call_operand.vmem [shape: f32[2,1], index: 1, kind: input, shape index: {}]
  %s2 = inlined_call_operand.hbm [shape: f32[2,32], index: 2, kind: output, shape index: {}]
  %s3 = sld [smem:[#allocation0]]
  $region30: #{tpu_custom_call.1} parent=0
    _
  %s5 = ssub.s32 1, %s3
  %s6 = scalar_select 0, %s5, %s3
  $region1: #{tpu_custom_call.1} parent=0
    #allocation3 [shape = 'u8[2048]{0}', space=vmem, size = 0x800, scoped, tag = 'input window, operand 0, single buffered']
    #allocation4 [shape = 's32[1]{0}', space=sflag, size = 0x4, scoped, tag = 'scoped memory for tpu_custom_call.1']
    #allocation5 [shape = 's32[1]{0}', space=sflag, size = 0x4, scoped, tag = 'scoped memory for tpu_custom_call.1']
    #allocation6 [shape = 'u8[1024]{0}', space=vmem, size = 0x400, scoped, tag = 'output window, operand 0, single buffered']
    %7 = vsyncpa [#allocation4], 0
    %8 = vsyncpa [#allocation5], 0
    // Predicated region
    $region2: #{tpu_custom_call.1} parent=1 // pred_check
      _
    $region3: #{tpu_custom_call.1} parent=1 // pred_check_branch
      %10 = sbr.rel (0) target = $region5
    $region4: #{tpu_custom_call.1} parent=1 // pred_region
      %s12 = ssub.s32 64, 64
      %13 = vsyncadd [#allocation4], %s12
      %s14 = sshll.u32 [#allocation3], 4
      %s15 = int_to_ptr.vmem [resolvable:$true] %s14
      %20 = dma.hbm_to_vmem [thread:$0]  %s0, 64, %s15, [#allocation4], 32, 32, 2
    $region5: #{tpu_custom_call.1} parent=1 // pred_fallthru
      _
    // Predicated region
    $region6: #{tpu_custom_call.1} parent=1 // pred_check
      _
    $region7: #{tpu_custom_call.1} parent=1 // pred_check_branch
      %22 = sbr.rel (0) target = $region9
    $region8: #{tpu_custom_call.1} parent=1 // pred_region
      _
    $region9: #{tpu_custom_call.1} parent=1 // pred_fallthru
      _
    // Predicated region
    $region10: #{tpu_custom_call.1} parent=1 // pred_check
      _
    $region11: #{tpu_custom_call.1} parent=1 // pred_check_branch
      %24 = sbr.rel (0) target = $region13
    $region12: #{tpu_custom_call.1} parent=1 // pred_region
      %25 = dma.done [#allocation4], 64
    $region13: #{tpu_custom_call.1} parent=1 // pred_fallthru
      _
    %p26 = scmp.eq.s32.totalorder 0, 0
    // Predicated region
    $region14: #{tpu_custom_call.1} parent=1 // pred_check
      %p27 = pneg %p26
    $region15: #{tpu_custom_call.1} parent=1 // pred_check_branch
      %29 = sbr.rel (%p27) target = $region17
    $region16: #{tpu_custom_call.1} parent=1 // pred_region
      %30 = vst [vmem:[#allocation2] sm:$0x3] 0.0
      %31 = vst [vmem:[#allocation2 + $0x2] sm:$0x3] 0.0
    $region17: #{tpu_custom_call.1} parent=1 // pred_fallthru
      _
    %v32 = vld [vmem:[#allocation3] sm:$0x3]
    %v33 = vld [vmem:[#allocation3 + $0x2] sm:$0x3]
    %v34 = vld [vmem:[#allocation2] sm:$0x3]
    %v35 = vld [vmem:[#allocation2 + $0x2] sm:$0x3]
    %v36 = vadd.f32 %v34, %v32
    %v37 = vadd.f32 %v35, %v33
    %38 = vst [vmem:[#allocation2] sm:$0x3] %v36
    %39 = vst [vmem:[#allocation2 + $0x2] sm:$0x3] %v37
    // Predicated region
    $region18: #{tpu_custom_call.1} parent=1 // pred_check
      %p40 = pneg %p26
    $region19: #{tpu_custom_call.1} parent=1 // pred_check_branch
      %42 = sbr.rel (%p40) target = $region21
    $region20: #{tpu_custom_call.1} parent=1 // pred_region
      %v43 = vld [vmem:[#allocation2] sm:$0x3]
      %v44 = vld [vmem:[#allocation2 + $0x2] sm:$0x3]
      %vm45 = vcmask 1041408
      %v46 = vsel %vm45, %v43, 0.0
      %v47 = vrot.slane %v46, 4
      %v48 = vadd.f32 %v46, %v47
      %v49 = vrot.slane %v48, 2
      %v50 = vadd.f32 %v48, %v49
      %v51 = vrot.slane %v50, 1
      %v52 = vadd.f32 %v50, %v51
      %v53 = vsel %vm45, %v44, 0.0
      %v54 = vrot.slane %v53, 4
      %v55 = vadd.f32 %v53, %v54
      %v56 = vrot.slane %v55, 2
      %v57 = vadd.f32 %v55, %v56
      %v58 = vrot.slane %v57, 1
      %v59 = vadd.f32 %v57, %v58
      %62 = vrot.lane.b32.xlu0 %v52, 96
      %v63 = vpop.permute.xlu0 %62
      %64 = vrot.lane.b32.xlu0 %v59, 96
      %v65 = vpop.permute.xlu0 %64
      %v68 = vadd.f32 %v52, %v63
      %v69 = vadd.f32 %v59, %v65
      %70 = vrot.lane.b32.xlu0 %v52, 64
      %v71 = vpop.permute.xlu0 %70
      %72 = vrot.lane.b32.xlu0 %v59, 64
      %v73 = vpop.permute.xlu0 %72
      %v76 = vadd.f32 %v68, %v71
      %v77 = vadd.f32 %v69, %v73
      %78 = vrot.lane.b32.xlu0 %v52, 32
      %v79 = vpop.permute.xlu0 %78
      %80 = vrot.lane.b32.xlu0 %v59, 32
      %v81 = vpop.permute.xlu0 %80
      %v84 = vadd.f32 %v76, %v79
      %v85 = vadd.f32 %v77, %v81
      %v86 = vld [vmem:[%s1] sm:$0x3]
      %v87 = vrcp.pop %v86
      %89 = vset.pattern.permute.xlu0 0
      %90 = vperm.xlu0 %89, %v87
      %v91 = vpop.permute.xlu0 %90
      %v92 = vrot.slane %v91, 1
      %v95 = vmul.f32 %v84, %v91
      %v96 = vmul.f32 %v85, %v92
      %v99 = vrot.slane %v96, 7
      %vm100 = vcmask 1041409
      %v101 = vsel %vm100, %v99, %v95
      %vm103 = vcmask 254976
      %104 = vst.msk [vmem:[#allocation6] sm:$0x3] %vm103, %v101
    $region21: #{tpu_custom_call.1} parent=1 // pred_fallthru
      _
    // Predicated region
    $region22: #{tpu_custom_call.1} parent=1 // pred_check
      _
    $region23: #{tpu_custom_call.1} parent=1 // pred_check_branch
      %106 = sbr.rel (0) target = $region25
    $region24: #{tpu_custom_call.1} parent=1 // pred_region
      %s108 = ssub.s32 32, 32
      %109 = vsyncadd [#allocation5], %s108
      %s111 = sshll.u32 [#allocation6], 4
      %s112 = int_to_ptr.vmem [resolvable:$true] %s111
      %114 = dma.vmem_to_hbm [thread:$0]  %s112, 32, %s2, [#allocation5]
    $region25: #{tpu_custom_call.1} parent=1 // pred_fallthru
      _
    // Predicated region
    $region26: #{tpu_custom_call.1} parent=1 // pred_check
      _
    $region27: #{tpu_custom_call.1} parent=1 // pred_check_branch
      %116 = sbr.rel (0) target = $region29
    $region28: #{tpu_custom_call.1} parent=1 // pred_region
      %117 = dma.done [#allocation5], 32
    $region29: #{tpu_custom_call.1} parent=1 // pred_fallthru
      _
    %118 = vsyncpa [#allocation4], 1
    %119 = vsyncpa [#allocation5], 1

</llo_original>
